<compile_context>
chip_gen: v7x
topology: tpu7x:2x2x1
jax: 0.10.0
libtpu: 0.0.40
codegen_flags: <defaults>
</compile_context>

<pallas_src>
import math

import jax
import jax.numpy as jnp
from jax.experimental import pallas as pl
from jax.experimental.pallas import tpu as pltpu


def _channel_att_kernel(x_ref, w1b_ref, b1_ref, w2b_ref, b2_ref, o_ref):
    # x_ref:   (R, HW)        R = Nb*C rows (sample-major, channel-minor)
    # w1b_ref: (Nb*Cr, R)     block-diag of Nb copies of conv1 weight (Cr, C)
    # b1_ref:  (Nb*Cr, 1)     conv1 bias, tiled per sample
    # w2b_ref: (R, Nb*Cr)     block-diag of Nb copies of conv2 weight (C, Cr)
    # b2_ref:  (R, 1)         conv2 bias, tiled per sample
    # o_ref:   (R, HW)
    x = x_ref[...]                                              # input dtype

    # Squeeze: AdaptiveAvgPool2d(1) == per-row mean over the lane (spatial) axis.
    # Accumulate in f32 regardless of input dtype.
    pooled = jnp.mean(x.astype(jnp.float32), axis=-1, keepdims=True)   # (R, 1)

    # Excite: the two 1x1 convs as per-sample (block-diagonal) mat-vec products.
    # Everything stays column-oriented -> no relayout on the critical chain.
    h = jnp.dot(w1b_ref[...], pooled,
                preferred_element_type=jnp.float32) + b1_ref[...]      # (Nb*Cr, 1)
    h = jnp.maximum(h, 0.0)                                            # ReLU
    s = jnp.dot(w2b_ref[...], h,
                preferred_element_type=jnp.float32) + b2_ref[...]      # (R, 1)
    ca = jax.nn.sigmoid(s)                                             # (R, 1)

    # Scale: broadcast the per-row gate over the spatial axis in the input
    # dtype (avoids doubling vreg pressure for bf16 inputs).
    o_ref[...] = (x * ca.astype(x.dtype)).astype(o_ref.dtype)


def _choose_batch_block(N, C, Cr, HW, itemsize):
    """Pick how many samples to process per grid step."""
    # Nb multiple that makes Nb*C a multiple of 8 (dense sublane packing).
    mult = 8 // math.gcd(C, 8)
    # Conservative VMEM budget (v7x: 64 MiB physical per TC, double-buffered
    # in + out slabs plus the block-diagonal weights must fit comfortably).
    slab_budget = 6 * 1024 * 1024          # bytes per (Nb*C, HW) slab
    weight_budget = 2 * 1024 * 1024        # bytes per block-diagonal weight
    nb_slab = max(1, slab_budget // (C * HW * itemsize))
    nb_w = max(1, int(math.isqrt(max(1, weight_budget // (4 * C * Cr)))))
    nb = min(N, nb_slab, nb_w)
    # Keep at least 2 grid steps when the batch allows it (v7x has 2 TCs that
    # share the "parallel" grid axis).
    if N > mult and nb > -(-N // 2):
        nb = -(-N // 2)
    # Round down to the sublane-packing multiple (unless that would hit zero).
    if nb >= mult:
        nb = (nb // mult) * mult
    return nb


def channel_att(x_nchw, w1, b1, w2, b2):
    """Applies ChannelAtt. x_nchw: (N, C, H, W). w1: (Cr, C), w2: (C, Cr)."""
    N, C, H, W = x_nchw.shape
    Cr = w1.shape[0]
    HW = H * W
    itemsize = jnp.dtype(x_nchw.dtype).itemsize

    nb = _choose_batch_block(N, C, Cr, HW, itemsize)
    n_pad = (-N) % nb
    Np = N + n_pad

    # Fold (N, C) onto the sublane axis: rows are sample-major, channel-minor.
    x2 = x_nchw.reshape(N * C, HW)
    if n_pad:
        # Padded samples are computed independently and sliced off afterwards.
        x2 = jnp.pad(x2, ((0, n_pad * C), (0, 0)))

    # Block-diagonal weights / tiled biases so the excite path works directly
    # on the folded (Nb*C, 1) pooled column (no in-kernel reshape needed).
    eye = jnp.eye(nb, dtype=jnp.float32)
    w1b = jnp.kron(eye, w1.astype(jnp.float32))               # (nb*Cr, nb*C)
    w2b = jnp.kron(eye, w2.astype(jnp.float32))               # (nb*C, nb*Cr)
    b1r = jnp.tile(b1.astype(jnp.float32), nb).reshape(nb * Cr, 1)
    b2r = jnp.tile(b2.astype(jnp.float32), nb).reshape(nb * C, 1)

    R = nb * C
    grid = (Np // nb,)

    out2 = pl.pallas_call(
        _channel_att_kernel,
        out_shape=jax.ShapeDtypeStruct((Np * C, HW), x_nchw.dtype),
        grid_spec=pltpu.PrefetchScalarGridSpec(
            num_scalar_prefetch=0,
            grid=grid,
            in_specs=[
                pl.BlockSpec((R, HW), lambda i: (i, 0)),
                pl.BlockSpec((nb * Cr, R), lambda i: (0, 0)),
                pl.BlockSpec((nb * Cr, 1), lambda i: (0, 0)),
                pl.BlockSpec((R, nb * Cr), lambda i: (0, 0)),
                pl.BlockSpec((R, 1), lambda i: (0, 0)),
            ],
            out_specs=pl.BlockSpec((R, HW), lambda i: (i, 0)),
        ),
        compiler_params=pltpu.CompilerParams(
            dimension_semantics=("parallel",),
            vmem_limit_bytes=48 * 1024 * 1024,
        ),
    )(x2, w1b, b1r, w2b, b2r)

    if n_pad:
        out2 = out2[: N * C]
    return out2.reshape(N, C, H, W)


def _reference(x, w1, b1, w2, b2):
    # Plain-JAX reference matching the PyTorch forward exactly.
    pooled = jnp.mean(x, axis=(2, 3))                  # (N, C)
    h = jnp.maximum(pooled @ w1.T + b1, 0.0)           # (N, Cr)
    ca = jax.nn.sigmoid(h @ w2.T + b2)                 # (N, C)
    return x * ca[:, :, None, None]


if __name__ == "__main__":
    # Small shapes consistent with the module: channels=4, reduction=4.
    N, C, H, W = 2, 4, 16, 16
    reduction = 4
    Cr = C // reduction

    key = jax.random.PRNGKey(0)
    kx, k1, k2, k3, k4 = jax.random.split(key, 5)

    x = jax.random.normal(kx, (N, C, H, W), dtype=jnp.float32)

    # Deterministic parameter init (Conv2d 1x1 weights collapsed to 2-D).
    bound1 = 1.0 / jnp.sqrt(C)
    w1 = jax.random.uniform(k1, (Cr, C), jnp.float32, -bound1, bound1)
    b1 = jax.random.uniform(k2, (Cr,), jnp.float32, -bound1, bound1)
    bound2 = 1.0 / jnp.sqrt(Cr)
    w2 = jax.random.uniform(k3, (C, Cr), jnp.float32, -bound2, bound2)
    b2 = jax.random.uniform(k4, (C,), jnp.float32, -bound2, bound2)

    out = channel_att(x, w1, b1, w2, b2)
    out = jax.block_until_ready(out)

    ref = _reference(x, w1, b1, w2, b2)
    assert out.shape == (N, C, H, W)
    assert jnp.allclose(out, ref, atol=1e-5, rtol=1e-5), "mismatch vs reference"

    print("KERNEL_OK")
</pallas_src>

<mosaic_0001>
module attributes {stable_mosaic.version = 11 : i64} {
  func.func @_channel_att_kernel(%arg0: i32, %arg1: memref<8x256xf32, #tpu.memory_space<vmem>>, %arg2: memref<2x8xf32, #tpu.memory_space<vmem>>, %arg3: memref<2x1xf32, #tpu.memory_space<vmem>>, %arg4: memref<8x2xf32, #tpu.memory_space<vmem>>, %arg5: memref<8x1xf32, #tpu.memory_space<vmem>>, %arg6: memref<8x256xf32, #tpu.memory_space<vmem>>) attributes {dimension_semantics = [#tpu.dimension_semantics<parallel>], iteration_bounds = array<i64: 1>, scalar_prefetch = 0 : i64, scratch_operands = 0 : i64, tpu.core_type = #tpu.core_type<tc>, window_params = [{transform_indices = @transform_0, window_bounds = array<i64: 8, 256>}, {pipeline_mode = #tpu.pipeline_mode<synchronous>, transform_indices = @transform_1, window_bounds = array<i64: 2, 8>}, {pipeline_mode = #tpu.pipeline_mode<synchronous>, transform_indices = @transform_2, window_bounds = array<i64: 2, 1>}, {pipeline_mode = #tpu.pipeline_mode<synchronous>, transform_indices = @transform_3, window_bounds = array<i64: 8, 2>}, {pipeline_mode = #tpu.pipeline_mode<synchronous>, transform_indices = @transform_4, window_bounds = array<i64: 8, 1>}, {transform_indices = @transform_5, window_bounds = array<i64: 8, 256>}]} {
    %c0 = arith.constant 0 : index
    %c0_0 = arith.constant 0 : index
    %0 = vector.load %arg1[%c0, %c0_0] : memref<8x256xf32, #tpu.memory_space<vmem>>, vector<8x256xf32>
    %cst = arith.constant dense<0.000000e+00> : vector<8xf32>
    %1 = vector.multi_reduction <add>, %0, %cst [1] : vector<8x256xf32> to vector<8xf32>
    %2 = vector.shape_cast %1 : vector<8xf32> to vector<8x1xf32>
    %cst_1 = arith.constant 2.560000e+02 : f32
    %3 = vector.broadcast %cst_1 : f32 to vector<8x1xf32>
    %4 = arith.divf %2, %3 : vector<8x1xf32>
    %c0_2 = arith.constant 0 : index
    %c0_3 = arith.constant 0 : index
    %5 = vector.load %arg2[%c0_2, %c0_3] : memref<2x8xf32, #tpu.memory_space<vmem>>, vector<2x8xf32>
    %cst_4 = arith.constant dense<0.000000e+00> : vector<2x1xf32>
    %6 = tpu.matmul %5, %4, %cst_4 {dimension_numbers = #tpu.dot_dimension_numbers<[1], [0], [0], [1], [0, 0, 1, 1], [], []>} : vector<2x8xf32>, vector<8x1xf32>, vector<2x1xf32> -> vector<2x1xf32>
    %c0_5 = arith.constant 0 : index
    %c0_6 = arith.constant 0 : index
    %7 = vector.load %arg3[%c0_5, %c0_6] : memref<2x1xf32, #tpu.memory_space<vmem>>, vector<2x1xf32>
    %8 = arith.addf %6, %7 : vector<2x1xf32>
    %cst_7 = arith.constant 0.000000e+00 : f32
    %9 = vector.broadcast %cst_7 : f32 to vector<2x1xf32>
    %10 = arith.maximumf %8, %9 : vector<2x1xf32>
    %c0_8 = arith.constant 0 : index
    %c0_9 = arith.constant 0 : index
    %11 = vector.load %arg4[%c0_8, %c0_9] : memref<8x2xf32, #tpu.memory_space<vmem>>, vector<8x2xf32>
    %cst_10 = arith.constant dense<0.000000e+00> : vector<8x1xf32>
    %12 = tpu.matmul %11, %10, %cst_10 {dimension_numbers = #tpu.dot_dimension_numbers<[1], [0], [0], [1], [0, 0, 1, 1], [], []>} : vector<8x2xf32>, vector<2x1xf32>, vector<8x1xf32> -> vector<8x1xf32>
    %c0_11 = arith.constant 0 : index
    %c0_12 = arith.constant 0 : index
    %13 = vector.load %arg5[%c0_11, %c0_12] : memref<8x1xf32, #tpu.memory_space<vmem>>, vector<8x1xf32>
    %14 = arith.addf %12, %13 : vector<8x1xf32>
    %15 = arith.negf %14 : vector<8x1xf32>
    %16 = math.exp %15 : vector<8x1xf32>
    %cst_13 = arith.constant 1.000000e+00 : f32
    %17 = vector.broadcast %cst_13 : f32 to vector<8x1xf32>
    %18 = arith.addf %17, %16 : vector<8x1xf32>
    %19 = arith.divf %17, %18 : vector<8x1xf32>
    %20 = vector.broadcast %19 : vector<8x1xf32> to vector<8x256xf32>
    %21 = arith.mulf %0, %20 : vector<8x256xf32>
    %c0_14 = arith.constant 0 : index
    %c0_15 = arith.constant 0 : index
    %22 = vector.load %arg6[%c0_14, %c0_15] : memref<8x256xf32, #tpu.memory_space<vmem>>, vector<8x256xf32>
    tpu.vector_store %arg6[%c0_14, %c0_15], %21 {strides = array<i32>} : memref<8x256xf32, #tpu.memory_space<vmem>>, vector<8x256xf32>,
    return
  }
  func.func @transform_0(%arg0: i32) -> (i32, i32) {
    %c0_i32 = arith.constant 0 : i32
    %c0_i32_0 = arith.constant 0 : i32
    return %arg0, %c0_i32 : i32, i32
  }
  func.func @transform_1(%arg0: i32) -> (i32, i32) {
    %c0_i32 = arith.constant 0 : i32
    %c0_i32_0 = arith.constant 0 : i32
    %c0_i32_1 = arith.constant 0 : i32
    return %c0_i32, %c0_i32_0 : i32, i32
  }
  func.func @transform_2(%arg0: i32) -> (i32, i32) {
    %c0_i32 = arith.constant 0 : i32
    %c0_i32_0 = arith.constant 0 : i32
    %c0_i32_1 = arith.constant 0 : i32
    return %c0_i32, %c0_i32_0 : i32, i32
  }
  func.func @transform_3(%arg0: i32) -> (i32, i32) {
    %c0_i32 = arith.constant 0 : i32
    %c0_i32_0 = arith.constant 0 : i32
    %c0_i32_1 = arith.constant 0 : i32
    return %c0_i32, %c0_i32_0 : i32, i32
  }
  func.func @transform_4(%arg0: i32) -> (i32, i32) {
    %c0_i32 = arith.constant 0 : i32
    %c0_i32_0 = arith.constant 0 : i32
    %c0_i32_1 = arith.constant 0 : i32
    return %c0_i32, %c0_i32_0 : i32, i32
  }
  func.func @transform_5(%arg0: i32) -> (i32, i32) {
    %c0_i32 = arith.constant 0 : i32
    %c0_i32_0 = arith.constant 0 : i32
    return %arg0, %c0_i32 : i32, i32
  }
}

</mosaic_0001>

<llo_original>
// kernel: tpu_custom_call.1
$region0: #{tpu_custom_call.1}
  #allocation0 [shape = 'u32[]', space=smem, size = 0x4, offset = 0x4, fixed_abs, tag = 'smem constant byte address 0x4 - core index']
  #allocation1 [shape = 'u32[144,128]{1,0:T(1,128)}', space=vmem, size = 0x12000, scoped, tag = 'internal scratch']
  %s0 = inlined_call_operand.vmem [shape: f32[8,256], index: 0, kind: input, shape index: {}]
  %s1 = inlined_call_operand.vmem [shape: f32[2,8], index: 1, kind: input, shape index: {}]
  %s2 = inlined_call_operand.vmem [shape: f32[2,1], index: 2, kind: input, shape index: {}]
  %s3 = inlined_call_operand.vmem [shape: f32[8,2], index: 3, kind: input, shape index: {}]
  %s4 = inlined_call_operand.vmem [shape: f32[8,1], index: 4, kind: input, shape index: {}]
  %s5 = inlined_call_operand.hbm [shape: f32[8,256], index: 5, kind: output, shape index: {}]
  %s6 = sld [smem:[#allocation0]]
  $region30: #{tpu_custom_call.1} parent=0
    _
  %s8 = ssub.s32 1, %s6
  %s9 = scalar_select 0, %s8, %s6
  $region1: #{tpu_custom_call.1} parent=0
    #allocation2 [shape = 'u8[8192]{0}', space=vmem, size = 0x2000, scoped, tag = 'output window, operand 0, single buffered']
    #allocation3 [shape = 's32[1]{0}', space=sflag, size = 0x4, scoped, tag = 'scoped memory for tpu_custom_call.1']
    %10 = vsyncpa [#allocation3], 0
    // Predicated region
    $region2: #{tpu_custom_call.1} parent=1 // pred_check
      _
    $region3: #{tpu_custom_call.1} parent=1 // pred_check_branch
      %12 = sbr.rel (0) target = $region5
    $region4: #{tpu_custom_call.1} parent=1 // pred_region
      _
    $region5: #{tpu_custom_call.1} parent=1 // pred_fallthru
      _
    // Predicated region
    $region6: #{tpu_custom_call.1} parent=1 // pred_check
      _
    $region7: #{tpu_custom_call.1} parent=1 // pred_check_branch
      %14 = sbr.rel (0) target = $region9
    $region8: #{tpu_custom_call.1} parent=1 // pred_region
      _
    $region9: #{tpu_custom_call.1} parent=1 // pred_fallthru
      _
    // Predicated region
    $region10: #{tpu_custom_call.1} parent=1 // pred_check
      _
    $region11: #{tpu_custom_call.1} parent=1 // pred_check_branch
      %16 = sbr.rel (0) target = $region13
    $region12: #{tpu_custom_call.1} parent=1 // pred_region
      _
    $region13: #{tpu_custom_call.1} parent=1 // pred_fallthru
      _
    // Predicated region
    $region14: #{tpu_custom_call.1} parent=1 // pred_check
      _
    $region15: #{tpu_custom_call.1} parent=1 // pred_check_branch
      %18 = sbr.rel (0) target = $region17
    $region16: #{tpu_custom_call.1} parent=1 // pred_region
      _
    $region17: #{tpu_custom_call.1} parent=1 // pred_fallthru
      _
    // Predicated region
    $region18: #{tpu_custom_call.1} parent=1 // pred_check
      _
    $region19: #{tpu_custom_call.1} parent=1 // pred_check_branch
      %20 = sbr.rel (0) target = $region21
    $region20: #{tpu_custom_call.1} parent=1 // pred_region
      _
    $region21: #{tpu_custom_call.1} parent=1 // pred_fallthru
      _
    %v21 = vld [vmem:[%s0] sm:$0xff]
    %v22 = vld [vmem:[%s0 + $0x8] sm:$0xff]
    %v23 = vadd.f32 %v21, %v22
    %24 = vadd.xlane.f32.xlu0 %v23
    %v25 = vpop.xlane.xlu0 %24
    %v26 = vrcp.pop 256.0
    %v27 = vmul.f32 %v25, %v26
    %v28 = vld [vmem:[%s1] sm:$0x3]
    %v29 = vld [vmem:[%s2] sm:$0x3]
    %vm30 = vcmask 64512
    %v32 = vsel %vm30, %v28, 0
    %34 = vmatprep.subr.mxu0 0.0
    %35 = vmatpush1.msra.mxu0 %v27
    %36 = vmatprep.subr.mxu0 0.0
    %37 = vmatpush1.msra.mxu0 0.0
    %38 = vmatprep.subr.mxu0 0.0
    %39 = vmatpush1.msra.mxu0 0.0
    %40 = vmatprep.subr.mxu0 0.0
    %41 = vmatpush1.msra.mxu0 0.0
    %42 = vmatprep.subr.mxu0 0.0
    %43 = vmatpush1.msra.mxu0 0.0
    %44 = vmatprep.subr.mxu0 0.0
    %45 = vmatpush1.msra.mxu0 0.0
    %46 = vmatprep.subr.mxu0 0.0
    %47 = vmatpush1.msra.mxu0 0.0
    %48 = vmatprep.subr.mxu0 0.0
    %49 = vmatpush1.msra.mxu0 0.0
    %50 = vmatprep.subr.mxu0 0.0
    %51 = vmatpush1.msra.mxu0 0.0
    %52 = vmatprep.subr.mxu0 0.0
    %53 = vmatpush1.msra.mxu0 0.0
    %54 = vmatprep.subr.mxu0 0.0
    %55 = vmatpush1.msra.mxu0 0.0
    %56 = vmatprep.subr.mxu0 0.0
    %57 = vmatpush1.msra.mxu0 0.0
    %58 = vmatprep.subr.mxu0 0.0
    %59 = vmatpush1.msra.mxu0 0.0
    %60 = vmatprep.subr.mxu0 0.0
    %61 = vmatpush1.msra.mxu0 0.0
    %62 = vmatprep.subr.mxu0 0.0
    %63 = vmatpush1.msra.mxu0 0.0
    %64 = vmatprep.subr.mxu0 0.0
    %65 = vmatpush1.msra.mxu0 0.0
    %66 = vmatprep.subr.mxu0 0.0
    %67 = vmatpush1.msra.mxu0 0.0
    %68 = vmatprep.subr.mxu0 0.0
    %69 = vmatpush1.msra.mxu0 0.0
    %70 = vmatprep.subr.mxu0 0.0
    %71 = vmatpush1.msra.mxu0 0.0
    %72 = vmatprep.subr.mxu0 0.0
    %73 = vmatpush1.msra.mxu0 0.0
    %74 = vmatprep.subr.mxu0 0.0
    %75 = vmatpush1.msra.mxu0 0.0
    %76 = vmatprep.subr.mxu0 0.0
    %77 = vmatpush1.msra.mxu0 0.0
    %78 = vmatprep.subr.mxu0 0.0
    %79 = vmatpush1.msra.mxu0 0.0
    %80 = vmatprep.subr.mxu0 0.0
    %81 = vmatpush1.msra.mxu0 0.0
    %82 = vmatprep.subr.mxu0 0.0
    %83 = vmatpush1.msra.mxu0 0.0
    %84 = vmatprep.subr.mxu0 0.0
    %85 = vmatpush1.msra.mxu0 0.0
    %86 = vmatprep.subr.mxu0 0.0
    %87 = vmatpush1.msra.mxu0 0.0
    %88 = vmatprep.subr.mxu0 0.0
    %89 = vmatpush1.msra.mxu0 0.0
    %90 = vmatprep.subr.mxu0 0.0
    %91 = vmatpush1.msra.mxu0 0.0
    %92 = vmatprep.subr.mxu0 0.0
    %93 = vmatpush1.msra.mxu0 0.0
    %94 = vmatprep.subr.mxu0 0.0
    %95 = vmatpush1.msra.mxu0 0.0
    %96 = vmatprep.subr.mxu0 0.0
    %97 = vmatpush1.msra.mxu0 0.0
    %98 = vmatprep.mubr.f32.mxu0 0.0
    %99 = vmatmul.mubr.f32.gmra.mrb[0].mxu0 %v32
    %v100 = vpop.f32.mrb[0].mxu0
    %v101 = vadd.f32 %v29, %v100
    %v102 = vpop.f32.mrb[0].mxu0
    %103 = vdwg.mxu0
    %v104 = vmax.f32 %v101, 0.0
    %v105 = vld [vmem:[%s3] sm:$0xff]
    %v106 = vld [vmem:[%s4] sm:$0xff]
    %vm107 = vcmask 15360
    %v109 = vsel %vm107, %v105, 0
    %vm111 = vcmask 1041408
    %v113 = vsel %vm111, %v104, 0
    %115 = vmatprep.subr.mxu0 0.0
    %116 = vmatpush1.msra.mxu0 %v113
    %117 = vmatprep.subr.mxu0 0.0
    %118 = vmatpush1.msra.mxu0 0.0
    %119 = vmatprep.subr.mxu0 0.0
    %120 = vmatpush1.msra.mxu0 0.0
    %121 = vmatprep.subr.mxu0 0.0
    %122 = vmatpush1.msra.mxu0 0.0
    %123 = vmatprep.subr.mxu0 0.0
    %124 = vmatpush1.msra.mxu0 0.0
    %125 = vmatprep.subr.mxu0 0.0
    %126 = vmatpush1.msra.mxu0 0.0
    %127 = vmatprep.subr.mxu0 0.0
    %128 = vmatpush1.msra.mxu0 0.0
    %129 = vmatprep.subr.mxu0 0.0
    %130 = vmatpush1.msra.mxu0 0.0
    %131 = vmatprep.subr.mxu0 0.0
    %132 = vmatpush1.msra.mxu0 0.0
    %133 = vmatprep.subr.mxu0 0.0
    %134 = vmatpush1.msra.mxu0 0.0
    %135 = vmatprep.subr.mxu0 0.0
    %136 = vmatpush1.msra.mxu0 0.0
    %137 = vmatprep.subr.mxu0 0.0
    %138 = vmatpush1.msra.mxu0 0.0
    %139 = vmatprep.subr.mxu0 0.0
    %140 = vmatpush1.msra.mxu0 0.0
    %141 = vmatprep.subr.mxu0 0.0
    %142 = vmatpush1.msra.mxu0 0.0
    %143 = vmatprep.subr.mxu0 0.0
    %144 = vmatpush1.msra.mxu0 0.0
    %145 = vmatprep.subr.mxu0 0.0
    %146 = vmatpush1.msra.mxu0 0.0
    %147 = vmatprep.subr.mxu0 0.0
    %148 = vmatpush1.msra.mxu0 0.0
    %149 = vmatprep.subr.mxu0 0.0
    %150 = vmatpush1.msra.mxu0 0.0
    %151 = vmatprep.subr.mxu0 0.0
    %152 = vmatpush1.msra.mxu0 0.0
    %153 = vmatprep.subr.mxu0 0.0
    %154 = vmatpush1.msra.mxu0 0.0
    %155 = vmatprep.subr.mxu0 0.0
    %156 = vmatpush1.msra.mxu0 0.0
    %157 = vmatprep.subr.mxu0 0.0
    %158 = vmatpush1.msra.mxu0 0.0
    %159 = vmatprep.subr.mxu0 0.0
    %160 = vmatpush1.msra.mxu0 0.0
    %161 = vmatprep.subr.mxu0 0.0
    %162 = vmatpush1.msra.mxu0 0.0
    %163 = vmatprep.subr.mxu0 0.0
    %164 = vmatpush1.msra.mxu0 0.0
    %165 = vmatprep.subr.mxu0 0.0
    %166 = vmatpush1.msra.mxu0 0.0
    %167 = vmatprep.subr.mxu0 0.0
    %168 = vmatpush1.msra.mxu0 0.0
    %169 = vmatprep.subr.mxu0 0.0
    %170 = vmatpush1.msra.mxu0 0.0
    %171 = vmatprep.subr.mxu0 0.0
    %172 = vmatpush1.msra.mxu0 0.0
    %173 = vmatprep.subr.mxu0 0.0
    %174 = vmatpush1.msra.mxu0 0.0
    %175 = vmatprep.subr.mxu0 0.0
    %176 = vmatpush1.msra.mxu0 0.0
    %177 = vmatprep.subr.mxu0 0.0
    %178 = vmatpush1.msra.mxu0 0.0
    %179 = vmatprep.mubr.f32.mxu0 0.0
    %180 = vmatmul.mubr.f32.gmra.mrb[0].mxu0 %v109
    %v181 = vpop.f32.mrb[0].mxu0
    %v182 = vadd.f32 %v106, %v181
    %v183 = vpop.f32.mrb[0].mxu0
    %184 = vdwg.mxu0
    %v185 = vxor.u32 %v182, 2147483648
    %v186 = vmul.f32 %v185, 1.442695
    %v187 = vpow.pop %v186
    %v188 = vadd.f32 %v187, 1.0
    %v189 = vrcp.pop %v188
    %v190 = vmul.f32 1.0, %v189
    %192 = vset.pattern.permute.xlu0 0
    %193 = vperm.xlu0 %192, %v190
    %v194 = vpop.permute.xlu0 %193
    %v196 = vmul.f32 %v21, %v194
    %v197 = vmul.f32 %v22, %v194
    %198 = vst [vmem:[#allocation2] sm:$0xff] %v196
    %199 = vst [vmem:[#allocation2 + $0x8] sm:$0xff] %v197
    // Predicated region
    $region22: #{tpu_custom_call.1} parent=1 // pred_check
      _
    $region23: #{tpu_custom_call.1} parent=1 // pred_check_branch
      %201 = sbr.rel (0) target = $region25
    $region24: #{tpu_custom_call.1} parent=1 // pred_region
      %s203 = ssub.s32 256, 256
      %204 = vsyncadd [#allocation3], %s203
      %s206 = sshll.u32 [#allocation2], 4
      %s207 = int_to_ptr.vmem [resolvable:$true] %s206
      %209 = dma.vmem_to_hbm [thread:$0]  %s207, 256, %s5, [#allocation3]
    $region25: #{tpu_custom_call.1} parent=1 // pred_fallthru
      _
    // Predicated region
    $region26: #{tpu_custom_call.1} parent=1 // pred_check
      _
    $region27: #{tpu_custom_call.1} parent=1 // pred_check_branch
      %211 = sbr.rel (0) target = $region29
    $region28: #{tpu_custom_call.1} parent=1 // pred_region
      %212 = dma.done [#allocation3], 256
    $region29: #{tpu_custom_call.1} parent=1 // pred_fallthru
      _
    %213 = vsyncpa [#allocation3], 1

</llo_original>
